<compile_context>
chip_gen: v7x
topology: tpu7x:2x2x1
jax: 0.10.0
libtpu: 0.0.40
codegen_flags: <defaults>
</compile_context>

<pallas_src>
import functools

import jax
import jax.numpy as jnp
from jax.experimental import pallas as pl
from jax.experimental.pallas import tpu as pltpu


def _round_up(x, m):
    return ((x + m - 1) // m) * m


def _state_action_kernel(obs_ref, act_ref,
                         w_obs_ref, b_obs_ref,
                         w_act_ref, b_act_ref,
                         w_main_ref, b_main_ref,
                         w_head_ref, b_head_ref,
                         out_ref, *, B_tile, T, H):
    f32 = jnp.float32
    bf16 = jnp.bfloat16

    # ---- observation_net: Linear(F_obs -> H) + ReLU, per timestep ----
    # f32 tile straight from HBM; bf16 cast done here (VPU, hidden under MXU).
    # T == 8 keeps the (B_tile, T, F) <-> (B_tile*T, F) reshapes sublane-aligned;
    # other T values stay correct (compiler may insert VMEM copies).
    obs2d = obs_ref[...].reshape(B_tile * T, -1).astype(bf16)     # (B_tile*T, F_obs)
    h = jnp.dot(obs2d, w_obs_ref[...], preferred_element_type=f32)
    h = jnp.maximum(h + b_obs_ref[...], 0.0)                      # (B_tile*T, H) f32
    h3 = h.reshape(B_tile, T, H)                                  # (B_tile, T, H)

    # ---- LamaPooling(['last', 'avg', 'max', 'softmax']) ----
    last = h3[:, T - 1, :]                                        # (B_tile, H)
    xs = h3[:, :T - 1, :]                                         # non-'last' pools drop last step
    sum_xs = jnp.sum(xs, axis=1)                                  # one T-reduction, reused
    avg = sum_xs * (1.0 / (T - 1))                                # 'avg'
    mx = jnp.max(xs, axis=1)                                      # 'max'
    # 'softmax' (TemporalAttentionPooling): Softmax over the size-1 channel dim
    # is identically 1.0, so the attention pool is exactly the plain timestep sum.
    sm = sum_xs

    # ---- action_net: Linear(F_act -> H) + ReLU ----
    a = jnp.dot(act_ref[...].astype(bf16), w_act_ref[...], preferred_element_type=f32)
    a = jnp.maximum(a + b_act_ref[...], 0.0)                      # (B_tile, H)

    # ---- main_net: Linear(5H -> M) + ReLU as ONE fused K=5H MXU matmul ----
    # Lane-concat in the module's order [last | avg | max | sm | act] (XLU work).
    pooled = jnp.concatenate([last, avg, mx, sm, a], axis=1).astype(bf16)  # (B_tile, 5H)
    z = jnp.dot(pooled, w_main_ref[...], preferred_element_type=f32)
    x = jnp.maximum(z + b_main_ref[...], 0.0)                     # (B_tile, M) f32

    # ---- head_net: Linear(M -> 1) as an f32 lane-reduce (avoid N=1 MXU matmul) ----
    y = jnp.sum(x * w_head_ref[...], axis=1, keepdims=True)       # (B_tile, 1)
    out_ref[...] = y + b_head_ref[0, 0]                           # scalar bias from SMEM


def state_action_net_lama(observation, action, params):
    """observation: (B, T, F_obs) f32; action: (B, F_act) f32 -> (B, 1) f32."""
    B, T, F_obs = observation.shape
    F_act = action.shape[-1]
    H = params["w_obs"].shape[1]
    M = params["w_main"].shape[1]
    assert T >= 2, "LamaPooling's non-'last' pools need at least 2 timesteps"
    assert params["w_main"].shape[0] == 5 * H

    # Batch tiling: big tiles amortize the ~0.35us per-step overhead; >= 2 grid
    # steps whenever B allows (v7x has 2 TCs); tile is a multiple of 8 (f32
    # sublanes) and sized so padding waste stays below one tile.  Trailing
    # partial blocks are handled by Pallas (OOB reads undefined / writes
    # discarded) and every op here is row-independent, so no wrapper pad.
    if B <= 8:
        B_tile = B                       # single full-array block for tiny batches
    else:
        n_tiles = max(2, pl.cdiv(B, 1024))
        B_tile = _round_up(pl.cdiv(B, n_tiles), 8)
    grid = (pl.cdiv(B, B_tile),)

    # Weights are tiny: cast to bf16 once in the wrapper.  Inputs stay f32 and
    # are cast in-kernel (no extra HBM pass over observation/action).
    w_obs = params["w_obs"].astype(jnp.bfloat16)
    w_act = params["w_act"].astype(jnp.bfloat16)
    w_main = params["w_main"].astype(jnp.bfloat16)
    w_head = params["w_head"].reshape(1, M).astype(jnp.float32)

    def _resident(shape):
        # Constant index_map -> same block every grid step -> no re-DMA, VMEM-resident.
        return pl.BlockSpec(shape, lambda i: (0, 0))

    in_specs = [
        pl.BlockSpec((B_tile, T, F_obs), lambda i: (i, 0, 0)),    # obs tile (pipelined)
        pl.BlockSpec((B_tile, F_act), lambda i: (i, 0)),          # action tile (pipelined)
        _resident((F_obs, H)),                                    # w_obs
        _resident((1, H)),                                        # b_obs
        _resident((F_act, H)),                                    # w_act
        _resident((1, H)),                                        # b_act
        _resident((5 * H, M)),                                    # w_main
        _resident((1, M)),                                        # b_main
        _resident((1, M)),                                        # w_head row
        pl.BlockSpec(memory_space=pltpu.MemorySpace.SMEM),        # b_head (1,1) scalar
    ]

    flops = 2 * B * (T * F_obs * H + F_act * H + 5 * H * M + M)
    bytes_accessed = (
        observation.size * 4 + action.size * 4 + B * 4
        + (w_obs.size + w_act.size + w_main.size) * 2
        + (params["b_obs"].size + params["b_act"].size + params["b_main"].size
           + w_head.size + params["b_head"].size) * 4)

    return pl.pallas_call(
        functools.partial(_state_action_kernel, B_tile=B_tile, T=T, H=H),
        grid=grid,
        in_specs=in_specs,
        out_specs=pl.BlockSpec((B_tile, 1), lambda i: (i, 0)),
        out_shape=jax.ShapeDtypeStruct((B, 1), jnp.float32),
        compiler_params=pltpu.CompilerParams(
            dimension_semantics=("parallel",),   # batch axis -> both TCs on v7x
            vmem_limit_bytes=32 * 1024 * 1024),
        cost_estimate=pl.CostEstimate(flops=flops, transcendentals=0,
                                      bytes_accessed=bytes_accessed),
    )(observation, action, w_obs, params["b_obs"], w_act, params["b_act"],
      w_main, params["b_main"], w_head, params["b_head"])


def _reference(observation, action, params):
    """Pure-JAX reference mirroring the PyTorch forward (bf16 MXU operands, f32 math).

    The softmax attention branch is computed *faithfully* here (Conv1d scores +
    Softmax over the size-1 channel dim) to demonstrate that dropping it inside
    the kernel is mathematically exact.
    """
    def mm(a, b):
        return jnp.dot(a.astype(jnp.bfloat16), b.astype(jnp.bfloat16),
                       preferred_element_type=jnp.float32)

    B, T, F_obs = observation.shape
    h = jnp.maximum(mm(observation.reshape(B * T, F_obs), params["w_obs"]) + params["b_obs"], 0.0)
    h3 = h.reshape(B, T, -1)
    last = h3[:, -1, :]
    xs = h3[:, :-1, :]
    avg = xs.mean(axis=1)
    mx = xs.max(axis=1)
    scores = jnp.einsum("bth,h->bt", xs, params["w_attn"][0]) + params["b_attn"][0, 0]
    attn = jax.nn.softmax(scores[:, None, :], axis=1)             # size-1 axis -> all ones
    sm = jnp.einsum("bot,bth->bh", attn, xs)
    lama = jnp.concatenate([last, avg, mx, sm], axis=1)
    a = jnp.maximum(mm(action, params["w_act"]) + params["b_act"], 0.0)
    x = jnp.concatenate([lama, a], axis=1)
    x = jnp.maximum(mm(x, params["w_main"]) + params["b_main"], 0.0)
    return jnp.sum(x * params["w_head"].reshape(1, -1), axis=1, keepdims=True) + params["b_head"]


def make_params(key, f_obs, f_act, hidden, main_hidden):
    ks = jax.random.split(key, 6)
    lama_out = 4 * hidden
    return {
        "w_obs": 0.1 * jax.random.normal(ks[0], (f_obs, hidden), jnp.float32),
        "b_obs": 0.01 * jnp.ones((1, hidden), jnp.float32),
        "w_act": 0.1 * jax.random.normal(ks[1], (f_act, hidden), jnp.float32),
        "b_act": 0.01 * jnp.ones((1, hidden), jnp.float32),
        # Conv1d(hidden -> 1, k=1) weight/bias: kept for fidelity but provably
        # unused by the forward pass (softmax over a size-1 dim == 1.0).
        "w_attn": 0.003 * jax.random.normal(ks[2], (1, hidden), jnp.float32),
        "b_attn": jnp.zeros((1, 1), jnp.float32),
        "w_main": 0.1 * jax.random.normal(ks[3], (lama_out + hidden, main_hidden), jnp.float32),
        "b_main": 0.01 * jnp.ones((1, main_hidden), jnp.float32),
        "w_head": 0.1 * jax.random.normal(ks[4], (main_hidden, 1), jnp.float32),
        "b_head": jnp.zeros((1, 1), jnp.float32),
    }


if __name__ == "__main__":
    T, F_OBS, F_ACT, H, M = 8, 16, 6, 32, 64

    key = jax.random.PRNGKey(0)
    k_obs, k_act, k_par = jax.random.split(key, 3)
    params = make_params(k_par, F_OBS, F_ACT, H, M)

    # Small-batch path (single full-array block).
    B = 2
    observation = jax.random.normal(k_obs, (B, T, F_OBS), jnp.float32)
    action = jax.random.normal(k_act, (B, F_ACT), jnp.float32)
    out = jax.block_until_ready(state_action_net_lama(observation, action, params))
    ref = _reference(observation, action, params)
    assert out.shape == (B, 1), out.shape
    assert jnp.allclose(out, ref, rtol=5e-3, atol=5e-3), (out, ref)

    # Larger batch exercising the multi-step grid / resident-weight path.
    B2 = 48
    obs2 = jax.random.normal(jax.random.PRNGKey(1), (B2, T, F_OBS), jnp.float32)
    act2 = jax.random.normal(jax.random.PRNGKey(2), (B2, F_ACT), jnp.float32)
    out2 = jax.block_until_ready(state_action_net_lama(obs2, act2, params))
    ref2 = _reference(obs2, act2, params)
    assert out2.shape == (B2, 1), out2.shape
    assert jnp.allclose(out2, ref2, rtol=5e-3, atol=5e-3), (out2, ref2)

    print("KERNEL_OK")
</pallas_src>

<mosaic_0001>
module attributes {stable_mosaic.version = 11 : i64} {
  func.func @_state_action_kernel(%arg0: i32, %arg1: memref<2x8x16xf32, #tpu.memory_space<vmem>>, %arg2: memref<2x6xf32, #tpu.memory_space<vmem>>, %arg3: memref<16x32xbf16, #tpu.memory_space<vmem>>, %arg4: memref<1x32xf32, #tpu.memory_space<vmem>>, %arg5: memref<6x32xbf16, #tpu.memory_space<vmem>>, %arg6: memref<1x32xf32, #tpu.memory_space<vmem>>, %arg7: memref<160x64xbf16, #tpu.memory_space<vmem>>, %arg8: memref<1x64xf32, #tpu.memory_space<vmem>>, %arg9: memref<1x64xf32, #tpu.memory_space<vmem>>, %arg10: memref<1x1xf32, #tpu.memory_space<smem>>, %arg11: memref<2x1xf32, #tpu.memory_space<vmem>>) attributes {dimension_semantics = [#tpu.dimension_semantics<parallel>], iteration_bounds = array<i64: 1>, scalar_prefetch = 0 : i64, scratch_operands = 0 : i64, tpu.core_type = #tpu.core_type<tc>, window_params = [{transform_indices = @transform_0, window_bounds = array<i64: 2, 8, 16>}, {transform_indices = @transform_1, window_bounds = array<i64: 2, 6>}, {pipeline_mode = #tpu.pipeline_mode<synchronous>, transform_indices = @transform_2, window_bounds = array<i64: 16, 32>}, {pipeline_mode = #tpu.pipeline_mode<synchronous>, transform_indices = @transform_3, window_bounds = array<i64: 1, 32>}, {pipeline_mode = #tpu.pipeline_mode<synchronous>, transform_indices = @transform_4, window_bounds = array<i64: 6, 32>}, {pipeline_mode = #tpu.pipeline_mode<synchronous>, transform_indices = @transform_5, window_bounds = array<i64: 1, 32>}, {pipeline_mode = #tpu.pipeline_mode<synchronous>, transform_indices = @transform_6, window_bounds = array<i64: 160, 64>}, {pipeline_mode = #tpu.pipeline_mode<synchronous>, transform_indices = @transform_7, window_bounds = array<i64: 1, 64>}, {pipeline_mode = #tpu.pipeline_mode<synchronous>, transform_indices = @transform_8, window_bounds = array<i64: 1, 64>}, {transform_indices = @transform_9, window_bounds = array<i64: 1, 1>}, {transform_indices = @transform_10, window_bounds = array<i64: 2, 1>}]} {
    %c0 = arith.constant 0 : index
    %c0_0 = arith.constant 0 : index
    %c0_1 = arith.constant 0 : index
    %0 = vector.load %arg1[%c0, %c0_0, %c0_1] : memref<2x8x16xf32, #tpu.memory_space<vmem>>, vector<2x8x16xf32>
    %1 = vector.shape_cast %0 : vector<2x8x16xf32> to vector<16x16xf32>
    %2 = arith.truncf %1 : vector<16x16xf32> to vector<16x16xbf16>
    %c0_2 = arith.constant 0 : index
    %c0_3 = arith.constant 0 : index
    %3 = vector.load %arg3[%c0_2, %c0_3] : memref<16x32xbf16, #tpu.memory_space<vmem>>, vector<16x32xbf16>
    %cst = arith.constant dense<0.000000e+00> : vector<16x32xf32>
    %4 = tpu.matmul %2, %3, %cst {dimension_numbers = #tpu.dot_dimension_numbers<[1], [0], [0], [1], [0, 0, 1, 1], [], []>} : vector<16x16xbf16>, vector<16x32xbf16>, vector<16x32xf32> -> vector<16x32xf32>
    %c0_4 = arith.constant 0 : index
    %c0_5 = arith.constant 0 : index
    %5 = vector.load %arg4[%c0_4, %c0_5] : memref<1x32xf32, #tpu.memory_space<vmem>>, vector<1x32xf32>
    %6 = vector.broadcast %5 : vector<1x32xf32> to vector<16x32xf32>
    %7 = arith.addf %4, %6 : vector<16x32xf32>
    %cst_6 = arith.constant 0.000000e+00 : f32
    %8 = vector.broadcast %cst_6 : f32 to vector<16x32xf32>
    %9 = arith.maximumf %7, %8 : vector<16x32xf32>
    %10 = vector.shape_cast %9 : vector<16x32xf32> to vector<2x8x32xf32>
    %11 = vector.extract_strided_slice %10 {offsets = [0, 7, 0], sizes = [2, 1, 32], strides = [1, 1, 1]} : vector<2x8x32xf32> to vector<2x1x32xf32>
    %12 = vector.shape_cast %11 : vector<2x1x32xf32> to vector<2x32xf32>
    %13 = vector.extract_strided_slice %10 {offsets = [0, 0, 0], sizes = [2, 7, 32], strides = [1, 1, 1]} : vector<2x8x32xf32> to vector<2x7x32xf32>
    %cst_7 = arith.constant dense<0.000000e+00> : vector<2x32xf32>
    %14 = vector.multi_reduction <add>, %13, %cst_7 [1] : vector<2x7x32xf32> to vector<2x32xf32>
    %cst_8 = arith.constant 0.142857149 : f32
    %15 = vector.broadcast %cst_8 : f32 to vector<2x32xf32>
    %16 = arith.mulf %14, %15 : vector<2x32xf32>
    %cst_9 = arith.constant dense<0xFF800000> : vector<2x32xf32>
    %17 = vector.multi_reduction <maximumf>, %13, %cst_9 [1] : vector<2x7x32xf32> to vector<2x32xf32>
    %c0_10 = arith.constant 0 : index
    %c0_11 = arith.constant 0 : index
    %18 = vector.load %arg2[%c0_10, %c0_11] : memref<2x6xf32, #tpu.memory_space<vmem>>, vector<2x6xf32>
    %19 = arith.truncf %18 : vector<2x6xf32> to vector<2x6xbf16>
    %c0_12 = arith.constant 0 : index
    %c0_13 = arith.constant 0 : index
    %20 = vector.load %arg5[%c0_12, %c0_13] : memref<6x32xbf16, #tpu.memory_space<vmem>>, vector<6x32xbf16>
    %cst_14 = arith.constant dense<0.000000e+00> : vector<2x32xf32>
    %21 = tpu.matmul %19, %20, %cst_14 {dimension_numbers = #tpu.dot_dimension_numbers<[1], [0], [0], [1], [0, 0, 1, 1], [], []>} : vector<2x6xbf16>, vector<6x32xbf16>, vector<2x32xf32> -> vector<2x32xf32>
    %c0_15 = arith.constant 0 : index
    %c0_16 = arith.constant 0 : index
    %22 = vector.load %arg6[%c0_15, %c0_16] : memref<1x32xf32, #tpu.memory_space<vmem>>, vector<1x32xf32>
    %23 = vector.broadcast %22 : vector<1x32xf32> to vector<2x32xf32>
    %24 = arith.addf %21, %23 : vector<2x32xf32>
    %cst_17 = arith.constant 0.000000e+00 : f32
    %25 = vector.broadcast %cst_17 : f32 to vector<2x32xf32>
    %26 = arith.maximumf %24, %25 : vector<2x32xf32>
    %27 = tpu.concatenate %12, %16, %17, %14, %26 in 1 : vector<2x32xf32>, vector<2x32xf32>, vector<2x32xf32>, vector<2x32xf32>, vector<2x32xf32> -> vector<2x160xf32>
    %28 = arith.truncf %27 : vector<2x160xf32> to vector<2x160xbf16>
    %c0_18 = arith.constant 0 : index
    %c0_19 = arith.constant 0 : index
    %29 = vector.load %arg7[%c0_18, %c0_19] : memref<160x64xbf16, #tpu.memory_space<vmem>>, vector<160x64xbf16>
    %cst_20 = arith.constant dense<0.000000e+00> : vector<2x64xf32>
    %30 = tpu.matmul %28, %29, %cst_20 {dimension_numbers = #tpu.dot_dimension_numbers<[1], [0], [0], [1], [0, 0, 1, 1], [], []>} : vector<2x160xbf16>, vector<160x64xbf16>, vector<2x64xf32> -> vector<2x64xf32>
    %c0_21 = arith.constant 0 : index
    %c0_22 = arith.constant 0 : index
    %31 = vector.load %arg8[%c0_21, %c0_22] : memref<1x64xf32, #tpu.memory_space<vmem>>, vector<1x64xf32>
    %32 = vector.broadcast %31 : vector<1x64xf32> to vector<2x64xf32>
    %33 = arith.addf %30, %32 : vector<2x64xf32>
    %cst_23 = arith.constant 0.000000e+00 : f32
    %34 = vector.broadcast %cst_23 : f32 to vector<2x64xf32>
    %35 = arith.maximumf %33, %34 : vector<2x64xf32>
    %c0_24 = arith.constant 0 : index
    %c0_25 = arith.constant 0 : index
    %36 = vector.load %arg9[%c0_24, %c0_25] : memref<1x64xf32, #tpu.memory_space<vmem>>, vector<1x64xf32>
    %37 = vector.broadcast %36 : vector<1x64xf32> to vector<2x64xf32>
    %38 = arith.mulf %35, %37 : vector<2x64xf32>
    %cst_26 = arith.constant dense<0.000000e+00> : vector<2xf32>
    %39 = vector.multi_reduction <add>, %38, %cst_26 [1] : vector<2x64xf32> to vector<2xf32>
    %40 = vector.shape_cast %39 : vector<2xf32> to vector<2x1xf32>
    %c0_27 = arith.constant 0 : index
    %c0_28 = arith.constant 0 : index
    %41 = memref.load %arg10[%c0_27, %c0_28] : memref<1x1xf32, #tpu.memory_space<smem>>
    %42 = vector.broadcast %41 : f32 to vector<2x1xf32>
    %43 = arith.addf %40, %42 : vector<2x1xf32>
    %c0_29 = arith.constant 0 : index
    %c0_30 = arith.constant 0 : index
    %44 = vector.load %arg11[%c0_29, %c0_30] : memref<2x1xf32, #tpu.memory_space<vmem>>, vector<2x1xf32>
    tpu.vector_store %arg11[%c0_29, %c0_30], %43 {strides = array<i32>} : memref<2x1xf32, #tpu.memory_space<vmem>>, vector<2x1xf32>,
    return
  }
  func.func @transform_0(%arg0: i32) -> (i32, i32, i32) {
    %c0_i32 = arith.constant 0 : i32
    %c0_i32_0 = arith.constant 0 : i32
    %c0_i32_1 = arith.constant 0 : i32
    return %arg0, %c0_i32, %c0_i32_0 : i32, i32, i32
  }
  func.func @transform_1(%arg0: i32) -> (i32, i32) {
    %c0_i32 = arith.constant 0 : i32
    %c0_i32_0 = arith.constant 0 : i32
    return %arg0, %c0_i32 : i32, i32
  }
  func.func @transform_2(%arg0: i32) -> (i32, i32) {
    %c0_i32 = arith.constant 0 : i32
    %c0_i32_0 = arith.constant 0 : i32
    %c0_i32_1 = arith.constant 0 : i32
    return %c0_i32, %c0_i32_0 : i32, i32
  }
  func.func @transform_3(%arg0: i32) -> (i32, i32) {
    %c0_i32 = arith.constant 0 : i32
    %c0_i32_0 = arith.constant 0 : i32
    %c0_i32_1 = arith.constant 0 : i32
    return %c0_i32, %c0_i32_0 : i32, i32
  }
  func.func @transform_4(%arg0: i32) -> (i32, i32) {
    %c0_i32 = arith.constant 0 : i32
    %c0_i32_0 = arith.constant 0 : i32
    %c0_i32_1 = arith.constant 0 : i32
    return %c0_i32, %c0_i32_0 : i32, i32
  }
  func.func @transform_5(%arg0: i32) -> (i32, i32) {
    %c0_i32 = arith.constant 0 : i32
    %c0_i32_0 = arith.constant 0 : i32
    %c0_i32_1 = arith.constant 0 : i32
    return %c0_i32, %c0_i32_0 : i32, i32
  }
  func.func @transform_6(%arg0: i32) -> (i32, i32) {
    %c0_i32 = arith.constant 0 : i32
    %c0_i32_0 = arith.constant 0 : i32
    %c0_i32_1 = arith.constant 0 : i32
    return %c0_i32, %c0_i32_0 : i32, i32
  }
  func.func @transform_7(%arg0: i32) -> (i32, i32) {
    %c0_i32 = arith.constant 0 : i32
    %c0_i32_0 = arith.constant 0 : i32
    %c0_i32_1 = arith.constant 0 : i32
    return %c0_i32, %c0_i32_0 : i32, i32
  }
  func.func @transform_8(%arg0: i32) -> (i32, i32) {
    %c0_i32 = arith.constant 0 : i32
    %c0_i32_0 = arith.constant 0 : i32
    %c0_i32_1 = arith.constant 0 : i32
    return %c0_i32, %c0_i32_0 : i32, i32
  }
  func.func @transform_9(%arg0: i32) -> (i32, i32) {
    %c0_i32 = arith.constant 0 : i32
    %c0_i32_0 = arith.constant 0 : i32
    %c0_i32_1 = arith.constant 0 : i32
    return %c0_i32, %c0_i32_0 : i32, i32
  }
  func.func @transform_10(%arg0: i32) -> (i32, i32) {
    %c0_i32 = arith.constant 0 : i32
    %c0_i32_0 = arith.constant 0 : i32
    return %arg0, %c0_i32 : i32, i32
  }
}

</mosaic_0001>

<llo_original>
// kernel: tpu_custom_call.1
$region0: #{tpu_custom_call.1}
  #allocation0 [shape = 'u32[]', space=smem, size = 0x4, offset = 0x4, fixed_abs, tag = 'smem constant byte address 0x4 - core index']
  #allocation1 [shape = 'u32[144,128]{1,0:T(1,128)}', space=vmem, size = 0x12000, scoped, tag = 'internal scratch']
  #allocation2 [shape = 'f32[1,1]{1,0:T(1,128)S(6)}', space=smem, size = 0x200, scoped, tag = 'scoped memory for tpu_custom_call.1']
  %s0 = inlined_call_operand.vmem [shape: f32[2,8,16], index: 0, kind: input, shape index: {}]
  %s1 = inlined_call_operand.vmem [shape: f32[2,6], index: 1, kind: input, shape index: {}]
  %s2 = inlined_call_operand.vmem [shape: bf16[16,32], index: 2, kind: input, shape index: {}]
  %s3 = inlined_call_operand.vmem [shape: f32[1,32], index: 3, kind: input, shape index: {}]
  %s4 = inlined_call_operand.vmem [shape: bf16[6,32], index: 4, kind: input, shape index: {}]
  %s5 = inlined_call_operand.vmem [shape: f32[1,32], index: 5, kind: input, shape index: {}]
  %s6 = inlined_call_operand.vmem [shape: bf16[160,64], index: 6, kind: input, shape index: {}]
  %s7 = inlined_call_operand.vmem [shape: f32[1,64], index: 7, kind: input, shape index: {}]
  %s8 = inlined_call_operand.vmem [shape: f32[1,64], index: 8, kind: input, shape index: {}]
  %s9 = inlined_call_operand.<no memory space> [shape: f32[1,1], index: 9, kind: input, shape index: {}]
  %s10 = inlined_call_operand.vmem [shape: f32[2,1], index: 10, kind: output, shape index: {}]
  %s11 = sld [smem:[#allocation0]]
  $region50: #{tpu_custom_call.1} parent=0
    _
  %s13 = ssub.s32 1, %s11
  %s14 = scalar_select 0, %s13, %s11
  %15 = sst [smem:[#allocation2]] %s9
  // Predicated region
  $region2: #{tpu_custom_call.1} parent=0 // pred_check
    _
  $region3: #{tpu_custom_call.1} parent=0 // pred_check_branch
    %17 = sbr.rel (0) target = $region5
  $region4: #{tpu_custom_call.1} parent=0 // pred_region
    _
  $region5: #{tpu_custom_call.1} parent=0 // pred_fallthru
    _
  // Predicated region
  $region6: #{tpu_custom_call.1} parent=0 // pred_check
    _
  $region7: #{tpu_custom_call.1} parent=0 // pred_check_branch
    %19 = sbr.rel (0) target = $region9
  $region8: #{tpu_custom_call.1} parent=0 // pred_region
    _
  $region9: #{tpu_custom_call.1} parent=0 // pred_fallthru
    _
  // Predicated region
  $region10: #{tpu_custom_call.1} parent=0 // pred_check
    _
  $region11: #{tpu_custom_call.1} parent=0 // pred_check_branch
    %21 = sbr.rel (0) target = $region13
  $region12: #{tpu_custom_call.1} parent=0 // pred_region
    _
  $region13: #{tpu_custom_call.1} parent=0 // pred_fallthru
    _
  // Predicated region
  $region14: #{tpu_custom_call.1} parent=0 // pred_check
    _
  $region15: #{tpu_custom_call.1} parent=0 // pred_check_branch
    %23 = sbr.rel (0) target = $region17
  $region16: #{tpu_custom_call.1} parent=0 // pred_region
    _
  $region17: #{tpu_custom_call.1} parent=0 // pred_fallthru
    _
  // Predicated region
  $region18: #{tpu_custom_call.1} parent=0 // pred_check
    _
  $region19: #{tpu_custom_call.1} parent=0 // pred_check_branch
    %25 = sbr.rel (0) target = $region21
  $region20: #{tpu_custom_call.1} parent=0 // pred_region
    _
  $region21: #{tpu_custom_call.1} parent=0 // pred_fallthru
    _
  // Predicated region
  $region22: #{tpu_custom_call.1} parent=0 // pred_check
    _
  $region23: #{tpu_custom_call.1} parent=0 // pred_check_branch
    %27 = sbr.rel (0) target = $region25
  $region24: #{tpu_custom_call.1} parent=0 // pred_region
    _
  $region25: #{tpu_custom_call.1} parent=0 // pred_fallthru
    _
  // Predicated region
  $region26: #{tpu_custom_call.1} parent=0 // pred_check
    _
  $region27: #{tpu_custom_call.1} parent=0 // pred_check_branch
    %29 = sbr.rel (0) target = $region29
  $region28: #{tpu_custom_call.1} parent=0 // pred_region
    _
  $region29: #{tpu_custom_call.1} parent=0 // pred_fallthru
    _
  // Predicated region
  $region30: #{tpu_custom_call.1} parent=0 // pred_check
    _
  $region31: #{tpu_custom_call.1} parent=0 // pred_check_branch
    %31 = sbr.rel (0) target = $region33
  $region32: #{tpu_custom_call.1} parent=0 // pred_region
    _
  $region33: #{tpu_custom_call.1} parent=0 // pred_fallthru
    _
  // Predicated region
  $region34: #{tpu_custom_call.1} parent=0 // pred_check
    _
  $region35: #{tpu_custom_call.1} parent=0 // pred_check_branch
    %33 = sbr.rel (0) target = $region37
  $region36: #{tpu_custom_call.1} parent=0 // pred_region
    _
  $region37: #{tpu_custom_call.1} parent=0 // pred_fallthru
    _
  // Predicated region
  $region38: #{tpu_custom_call.1} parent=0 // pred_check
    _
  $region39: #{tpu_custom_call.1} parent=0 // pred_check_branch
    %35 = sbr.rel (0) target = $region41
  $region40: #{tpu_custom_call.1} parent=0 // pred_region
    _
  $region41: #{tpu_custom_call.1} parent=0 // pred_fallthru
    _
  %v37 = vld [vmem:[%s0] sm:$0xff]
  %v38 = vld [vmem:[%s0 + $0x8] sm:$0xff]
  %v39 = vpack.c.bf16 %v38, %v37
  %v40 = vld [vmem:[%s2] sm:$0xf]
  %v41 = vld [vmem:[%s2 + $0x4] sm:$0xf]
  %v42 = vld [vmem:[%s3] sm:$0x1]
  %v44 = vlaneseq
  %v45 = vshrl.u32 %v44, 7
  %v46 = vsub.s32 0, %v45
  %v47 = vrot.slane %v42, %v46
  %v51 = vunpack.c.l.b16 %v40
  %v52 = vunpack.c.l.b16 %v41
  %v53 = vpack.c.b16 %v52, %v51
  %vm55 = vcmask 130048
  %v57 = vsel %vm55, %v39, 0
  %59 = vmatprep.subr.bf16.mxu0 0
  %60 = vmatpush1.bf16.msra.mxu0 %v53
  %61 = vmatprep.subr.bf16.mxu0 0
  %62 = vmatpush1.bf16.msra.mxu0 0
  %63 = vmatprep.subr.bf16.mxu0 0
  %64 = vmatpush1.bf16.msra.mxu0 0
  %65 = vmatprep.subr.bf16.mxu0 0
  %66 = vmatpush1.bf16.msra.mxu0 0
  %67 = vmatprep.subr.bf16.mxu0 0
  %68 = vmatpush1.bf16.msra.mxu0 0
  %69 = vmatprep.subr.bf16.mxu0 0
  %70 = vmatpush1.bf16.msra.mxu0 0
  %71 = vmatprep.subr.bf16.mxu0 0
  %72 = vmatpush1.bf16.msra.mxu0 0
  %73 = vmatprep.subr.bf16.mxu0 0
  %74 = vmatpush1.bf16.msra.mxu0 0
  %75 = vmatprep.subr.bf16.mxu0 0
  %76 = vmatpush1.bf16.msra.mxu0 0
  %77 = vmatprep.subr.bf16.mxu0 0
  %78 = vmatpush1.bf16.msra.mxu0 0
  %79 = vmatprep.subr.bf16.mxu0 0
  %80 = vmatpush1.bf16.msra.mxu0 0
  %81 = vmatprep.subr.bf16.mxu0 0
  %82 = vmatpush1.bf16.msra.mxu0 0
  %83 = vmatprep.subr.bf16.mxu0 0
  %84 = vmatpush1.bf16.msra.mxu0 0
  %85 = vmatprep.subr.bf16.mxu0 0
  %86 = vmatpush1.bf16.msra.mxu0 0
  %87 = vmatprep.subr.bf16.mxu0 0
  %88 = vmatpush1.bf16.msra.mxu0 0
  %89 = vmatprep.subr.bf16.mxu0 0
  %90 = vmatpush1.bf16.msra.mxu0 0
  %91 = vmatprep.mubr.bf16.mxu0 0
  %92 = vmatmul.mubr.bf16.gmra.mrb[0].mxu0 %v57
  %v93 = vpop.f32.mrb[0].mxu0
  %v94 = vadd.f32 %v47, %v93
  %v95 = vpop.f32.mrb[0].mxu0
  %v96 = vpop.f32.mrb[0].mxu0
  %v97 = vadd.f32 %v47, %v96
  %v98 = vpop.f32.mrb[0].mxu0
  %99 = vdwg.mxu0
  %v100 = vmax.f32 %v94, 0.0
  %v101 = vmax.f32 %v97, 0.0
  %vm102 = vcmask 260096
  %v103 = vsel %vm102, %v100, 0.0
  %v104 = vrot.slane %v103, 4
  %v105 = vadd.f32 %v103, %v104
  %v106 = vrot.slane %v105, 2
  %v107 = vadd.f32 %v105, %v106
  %v108 = vrot.slane %v107, 1
  %v109 = vadd.f32 %v107, %v108
  %v110 = vsel %vm102, %v101, 0.0
  %v111 = vrot.slane %v110, 4
  %v112 = vadd.f32 %v110, %v111
  %v113 = vrot.slane %v112, 2
  %v114 = vadd.f32 %v112, %v113
  %v115 = vrot.slane %v114, 1
  %v116 = vadd.f32 %v114, %v115
  %v117 = vmul.f32 %v109, 0.14285715
  %v118 = vmul.f32 %v116, 0.14285715
  %v119 = vsel %vm102, %v100, -inf
  %v120 = vrot.slane %v119, 4
  %v121 = vmax.f32 %v119, %v120
  %v122 = vrot.slane %v121, 2
  %v123 = vmax.f32 %v121, %v122
  %v124 = vrot.slane %v123, 1
  %v125 = vmax.f32 %v123, %v124
  %v126 = vsel %vm102, %v101, -inf
  %v127 = vrot.slane %v126, 4
  %v128 = vmax.f32 %v126, %v127
  %v129 = vrot.slane %v128, 2
  %v130 = vmax.f32 %v128, %v129
  %v131 = vrot.slane %v130, 1
  %v132 = vmax.f32 %v130, %v131
  %v133 = vld [vmem:[%s1] sm:$0x3]
  %v134 = vpack.c.bf16 %v133, %v133
  %v135 = vld [vmem:[%s4] sm:$0x7]
  %v136 = vld [vmem:[%s5] sm:$0x1]
  %v138 = vlaneseq
  %v139 = vshrl.u32 %v138, 7
  %v140 = vsub.s32 0, %v139
  %v141 = vrot.slane %v136, %v140
  %vm143 = vcmask 48128
  %v145 = vsel %vm143, %v134, 0
  %vm147 = vcmask 1042432
  %v149 = vsel %vm147, %v135, 0
  %151 = vmatprep.subr.bf16.mxu0 0
  %152 = vmatpush1.bf16.msra.mxu0 %v149
  %153 = vmatprep.subr.bf16.mxu0 0
  %154 = vmatpush1.bf16.msra.mxu0 0
  %155 = vmatprep.subr.bf16.mxu0 0
  %156 = vmatpush1.bf16.msra.mxu0 0
  %157 = vmatprep.subr.bf16.mxu0 0
  %158 = vmatpush1.bf16.msra.mxu0 0
  %159 = vmatprep.subr.bf16.mxu0 0
  %160 = vmatpush1.bf16.msra.mxu0 0
  %161 = vmatprep.subr.bf16.mxu0 0
  %162 = vmatpush1.bf16.msra.mxu0 0
  %163 = vmatprep.subr.bf16.mxu0 0
  %164 = vmatpush1.bf16.msra.mxu0 0
  %165 = vmatprep.subr.bf16.mxu0 0
  %166 = vmatpush1.bf16.msra.mxu0 0
  %167 = vmatprep.subr.bf16.mxu0 0
  %168 = vmatpush1.bf16.msra.mxu0 0
  %169 = vmatprep.subr.bf16.mxu0 0
  %170 = vmatpush1.bf16.msra.mxu0 0
  %171 = vmatprep.subr.bf16.mxu0 0
  %172 = vmatpush1.bf16.msra.mxu0 0
  %173 = vmatprep.subr.bf16.mxu0 0
  %174 = vmatpush1.bf16.msra.mxu0 0
  %175 = vmatprep.subr.bf16.mxu0 0
  %176 = vmatpush1.bf16.msra.mxu0 0
  %177 = vmatprep.subr.bf16.mxu0 0
  %178 = vmatpush1.bf16.msra.mxu0 0
  %179 = vmatprep.subr.bf16.mxu0 0
  %180 = vmatpush1.bf16.msra.mxu0 0
  %181 = vmatprep.subr.bf16.mxu0 0
  %182 = vmatpush1.bf16.msra.mxu0 0
  %183 = vmatprep.mubr.bf16.mxu0 0
  %184 = vmatmul.mubr.bf16.gmra.mrb[0].mxu0 %v145
  %v185 = vpop.f32.mrb[0].mxu0
  %v186 = vadd.f32 %v141, %v185
  %v187 = vpop.f32.mrb[0].mxu0
  %v188 = vpop.f32.mrb[0].mxu0
  %v189 = vpop.f32.mrb[0].mxu0
  %190 = vdwg.mxu0
  %v191 = vmax.f32 %v186, 0.0
  %v194 = vrot.slane %v101, 7
  %199 = vrot.lane.b32.xlu0 %v117, 32
  %v200 = vpop.permute.xlu0 %199
  %201 = vrot.lane.b32.xlu0 %v118, 32
  %v202 = vpop.permute.xlu0 %201
  %207 = vrot.lane.b32.xlu0 %v125, 64
  %v208 = vpop.permute.xlu0 %207
  %209 = vrot.lane.b32.xlu0 %v132, 64
  %v210 = vpop.permute.xlu0 %209
  %215 = vrot.lane.b32.xlu0 %v109, 96
  %v216 = vpop.permute.xlu0 %215
  %217 = vrot.lane.b32.xlu0 %v116, 96
  %v218 = vpop.permute.xlu0 %217
  %v222 = vrot.slane %v191, 1
  %vm224 = vcmask 261120
  %v225 = vsel %vm224, %v100, %v200
  %v226 = vsel %vm224, %v194, %v202
  %vm227 = vcmask 523264
  %v228 = vsel %vm227, %v225, %v208
  %v229 = vsel %vm227, %v226, %v210
  %vm230 = vcmask 785408
  %v231 = vsel %vm230, %v228, %v216
  %v232 = vsel %vm230, %v229, %v218
  %v233 = vpack.c.bf16 %v232, %v231
  %v234 = vpack.c.bf16 %v222, %v222
  %v235 = vld [vmem:[%s6] sm:$0xf]
  %v236 = vld [vmem:[%s6 + $0x4] sm:$0xf]
  %v237 = vld [vmem:[%s6 + $0x8] sm:$0xf]
  %v238 = vld [vmem:[%s6 + $0xc] sm:$0xf]
  %v239 = vld [vmem:[%s6 + $0x10] sm:$0xf]
  %v240 = vld [vmem:[%s6 + $0x14] sm:$0xf]
  %v241 = vld [vmem:[%s6 + $0x18] sm:$0xf]
  %v242 = vld [vmem:[%s6 + $0x1c] sm:$0xf]
  %v243 = vld [vmem:[%s6 + $0x20] sm:$0xf]
  %v244 = vld [vmem:[%s6 + $0x24] sm:$0xf]
  %v245 = vld [vmem:[%s6 + $0x28] sm:$0xf]
  %v246 = vld [vmem:[%s6 + $0x2c] sm:$0xf]
  %v247 = vld [vmem:[%s6 + $0x30] sm:$0xf]
  %v248 = vld [vmem:[%s6 + $0x34] sm:$0xf]
  %v249 = vld [vmem:[%s6 + $0x38] sm:$0xf]
  %v250 = vld [vmem:[%s6 + $0x3c] sm:$0xf]
  %v251 = vld [vmem:[%s6 + $0x40] sm:$0xf]
  %v252 = vld [vmem:[%s6 + $0x44] sm:$0xf]
  %v253 = vld [vmem:[%s6 + $0x48] sm:$0xf]
  %v254 = vld [vmem:[%s6 + $0x4c] sm:$0xf]
  %v255 = vld [vmem:[%s7] sm:$0x1]
  %v257 = vlaneseq
  %v258 = vshrl.u32 %v257, 7
  %v259 = vsub.s32 0, %v258
  %v260 = vrot.slane %v255, %v259
  %v263 = vshrl.u32 %v233, 16
  %v265 = vrot.slane %v263, 3
  %v266 = vshll.u32 %v233, 16
  %v268 = vrot.slane %v266, 4
  %v269 = vor.u32 %v265, %v268
  %v271 = vshrl.u32 %v234, 16
  %v273 = vrot.slane %v271, 3
  %v274 = vshll.u32 %v234, 16
  %v276 = vrot.slane %v274, 4
  %v277 = vor.u32 %v273, %v276
  %v299 = vunpack.c.l.b16 %v235
  %v300 = vunpack.c.l.b16 %v236
  %v301 = vunpack.c.l.b16 %v237
  %v302 = vunpack.c.l.b16 %v238
  %v303 = vunpack.c.l.b16 %v239
  %v304 = vunpack.c.l.b16 %v240
  %v305 = vunpack.c.l.b16 %v241
  %v306 = vunpack.c.l.b16 %v242
  %v307 = vunpack.c.l.b16 %v243
  %v308 = vunpack.c.l.b16 %v244
  %v309 = vunpack.c.l.b16 %v245
  %v310 = vunpack.c.l.b16 %v246
  %v311 = vunpack.c.l.b16 %v247
  %v312 = vunpack.c.l.b16 %v248
  %v313 = vunpack.c.l.b16 %v249
  %v314 = vunpack.c.l.b16 %v250
  %v315 = vunpack.c.l.b16 %v251
  %v316 = vunpack.c.l.b16 %v252
  %v317 = vunpack.c.l.b16 %v253
  %v318 = vunpack.c.l.b16 %v254
  %v319 = vpack.c.b16 %v300, %v299
  %v320 = vpack.c.b16 %v302, %v301
  %v321 = vpack.c.b16 %v304, %v303
  %v322 = vpack.c.b16 %v306, %v305
  %v323 = vpack.c.b16 %v308, %v307
  %v324 = vpack.c.b16 %v310, %v309
  %v325 = vpack.c.b16 %v312, %v311
  %v326 = vpack.c.b16 %v314, %v313
  %v327 = vpack.c.b16 %v316, %v315
  %v328 = vpack.c.b16 %v318, %v317
  %v340 = vsel %vm224, %v277, 0
  %342 = vmatprep.subr.bf16.mxu0 0
  %343 = vmatpush1.bf16.msra.mxu0 %v319
  %344 = vmatprep.subr.bf16.mxu0 0
  %345 = vmatpush1.bf16.msra.mxu0 %v320
  %346 = vmatprep.subr.bf16.mxu0 0
  %347 = vmatpush1.bf16.msra.mxu0 %v321
  %348 = vmatprep.subr.bf16.mxu0 0
  %349 = vmatpush1.bf16.msra.mxu0 %v322
  %350 = vmatprep.subr.bf16.mxu0 0
  %351 = vmatpush1.bf16.msra.mxu0 %v323
  %352 = vmatprep.subr.bf16.mxu0 0
  %353 = vmatpush1.bf16.msra.mxu0 %v324
  %354 = vmatprep.subr.bf16.mxu0 0
  %355 = vmatpush1.bf16.msra.mxu0 %v325
  %356 = vmatprep.subr.bf16.mxu0 0
  %357 = vmatpush1.bf16.msra.mxu0 %v326
  %358 = vmatprep.subr.bf16.mxu0 0
  %359 = vmatpush1.bf16.msra.mxu0 %v327
  %360 = vmatprep.subr.bf16.mxu0 0
  %361 = vmatpush1.bf16.msra.mxu0 %v328
  %362 = vmatprep.subr.bf16.mxu0 0
  %363 = vmatpush1.bf16.msra.mxu0 0
  %364 = vmatprep.subr.bf16.mxu0 0
  %365 = vmatpush1.bf16.msra.mxu0 0
  %366 = vmatprep.subr.bf16.mxu0 0
  %367 = vmatpush1.bf16.msra.mxu0 0
  %368 = vmatprep.subr.bf16.mxu0 0
  %369 = vmatpush1.bf16.msra.mxu0 0
  %370 = vmatprep.subr.bf16.mxu0 0
  %371 = vmatpush1.bf16.msra.mxu0 0
  %372 = vmatprep.subr.bf16.mxu0 0
  %373 = vmatpush1.bf16.msra.mxu0 0
  %374 = vmatprep.mubr.bf16.mxu0 %v340
  %375 = vmatmul.mubr.bf16.gmra.mrb[0].mxu0 %v269
  %v376 = vpop.f32.mrb[0].mxu0
  %v377 = vadd.f32 %v260, %v376
  %v378 = vpop.f32.mrb[0].mxu0
  %v379 = vpop.f32.mrb[0].mxu0
  %v380 = vpop.f32.mrb[0].mxu0
  %381 = vdwg.mxu0
  %v382 = vmax.f32 %v377, 0.0
  %v383 = vld [vmem:[%s8] sm:$0x1]
  %v385 = vlaneseq
  %v386 = vshrl.u32 %v385, 7
  %v387 = vsub.s32 0, %v386
  %v388 = vrot.slane %v383, %v387
  %v390 = vmul.f32 %v382, %v388
  %vm391 = vcmask 517120
  %v392 = vsel %vm391, %v390, 0.0
  %393 = vadd.xlane.f32.xlu0 %v392
  %v394 = vpop.xlane.xlu0 %393
  %s395 = sld [smem:[#allocation2]]
  %v396 = vstv %s395
  %v397 = vadd.f32 %v394, %v396
  %vm398 = vcmask 1024
  %399 = vst.msk [vmem:[%s10] sm:$0x3] %vm398, %v397
  // Predicated region
  $region42: #{tpu_custom_call.1} parent=0 // pred_check
    _
  $region43: #{tpu_custom_call.1} parent=0 // pred_check_branch
    %401 = sbr.rel (0) target = $region45
  $region44: #{tpu_custom_call.1} parent=0 // pred_region
    _
  $region45: #{tpu_custom_call.1} parent=0 // pred_fallthru
    _
  // Predicated region
  $region46: #{tpu_custom_call.1} parent=0 // pred_check
    _
  $region47: #{tpu_custom_call.1} parent=0 // pred_check_branch
    %403 = sbr.rel (0) target = $region49
  $region48: #{tpu_custom_call.1} parent=0 // pred_region
    _
  $region49: #{tpu_custom_call.1} parent=0 // pred_fallthru
    _

</llo_original>
